<compile_context>
chip_gen: v6e
topology: v6e:2x2x1
jax: 0.10.0
libtpu: 0.0.40
codegen_flags: <defaults>
</compile_context>

<pallas_src>
import functools

import jax
import jax.numpy as jnp
from jax.experimental import pallas as pl
from jax.experimental.pallas import tpu as pltpu


def _mlp_kernel(x_ref, w1_ref, b1_ref, w2_ref, b2_ref,
                w3_ref, b3_ref, w4t_ref, b4_ref, o_ref):
    """Fused 4-layer MLP for one batch tile, entirely in VMEM.

    Matmuls run on the MXU in bf16 with f32 accumulation; bias/ReLU/sigmoid stay f32
    on the VPU/EUP.
    """
    # Layer 1: Linear(input_dim, 256) + ReLU   (Dropout(0.4) -> identity in eval)
    # x arrives f32; cast to bf16 here (free under the DMA) instead of in the wrapper.
    h = jnp.dot(x_ref[...].astype(jnp.bfloat16), w1_ref[...],
                preferred_element_type=jnp.float32)
    h = jnp.maximum(h + b1_ref[...], 0.0)

    # Layer 2: Linear(256, 128) + ReLU         (Dropout(0.3) -> identity in eval)
    h = jnp.dot(h.astype(jnp.bfloat16), w2_ref[...], preferred_element_type=jnp.float32)
    h = jnp.maximum(h + b2_ref[...], 0.0)

    # Layer 3: Linear(128, 64) + ReLU          (Dropout(0.2) -> identity in eval)
    h = jnp.dot(h.astype(jnp.bfloat16), w3_ref[...], preferred_element_type=jnp.float32)
    h = jnp.maximum(h + b3_ref[...], 0.0)

    # Layer 4: Linear(64, 1) + Sigmoid, as w4^T (1,64) contracted with h (bt,64) over
    # the LAST dims of both operands (trans_b MXU matmul, no XLU transpose of h):
    # result (1, bt) is already lane-dense for the unmasked store below.
    z_row = jax.lax.dot_general(
        w4t_ref[...], h.astype(jnp.bfloat16),
        dimension_numbers=(((1,), (1,)), ((), ())),
        preferred_element_type=jnp.float32)              # (1, batch_tile)
    z_row = z_row + b4_ref[...]
    o_ref[0] = jax.nn.sigmoid(z_row).astype(o_ref.dtype)

    # TODO(synk): PyTorch training-mode Dropout uses torch RNG; not reproduced here
    # (eval-mode forward is implemented, which is the deterministic semantics).


def _round_up(n, m):
    return ((n + m - 1) // m) * m


def prepare_params(params):
    """One-time (outside jit) cast/reshape so per-call weight casts are not re-emitted.

    Input: {"w1".."w4": (fan_in, fan_out) f32, "b1".."b4": (1, fan_out) f32}.
    """
    return {
        "w1": params["w1"].astype(jnp.bfloat16),
        "w2": params["w2"].astype(jnp.bfloat16),
        "w3": params["w3"].astype(jnp.bfloat16),
        "w4t": params["w4"].reshape(1, -1).astype(jnp.bfloat16),   # (1, 64)
        "b1": params["b1"].astype(jnp.float32),
        "b2": params["b2"].astype(jnp.float32),
        "b3": params["b3"].astype(jnp.float32),
        "b4": params["b4"].reshape(1, 1).astype(jnp.float32),
    }


@functools.partial(jax.jit, static_argnames=("batch_tile",))
def churn_model_forward(x, prepared, *, batch_tile=2048):
    """x: (B, input_dim) float32. prepared: output of prepare_params. Returns (B, 1) f32."""
    assert batch_tile % 128 == 0 and batch_tile >= 128, \
        "batch_tile must be a multiple of 128 (lane-dense output)"

    B, in_dim = x.shape

    # Effective tile: clamp for tiny batches, and for large B keep >= 2 (even) tiles so
    # both v7x TensorCores get work from the "parallel" batch grid axis.
    tile = min(batch_tile,
               _round_up(B, 128),
               max(128, _round_up(-(-B // 2), 256)))

    padded_b = _round_up(B, tile)
    if padded_b != B:
        x = jnp.pad(x, ((0, padded_b - B), (0, 0)))
    num_tiles = padded_b // tile

    w1, w2, w3, w4t = prepared["w1"], prepared["w2"], prepared["w3"], prepared["w4t"]
    b1, b2, b3, b4 = prepared["b1"], prepared["b2"], prepared["b3"], prepared["b4"]

    # Small weights -> keep each whole weight resident in VMEM; only batch is tiled.
    def full(a):
        return pl.BlockSpec(a.shape, lambda i: (0,) * a.ndim)

    grid_spec = pltpu.PrefetchScalarGridSpec(
        num_scalar_prefetch=0,
        grid=(num_tiles,),
        in_specs=[
            pl.BlockSpec((tile, in_dim), lambda i: (i, 0)),   # x tile (f32)
            full(w1), full(b1),
            full(w2), full(b2),
            full(w3), full(b3),
            full(w4t), full(b4),
        ],
        # Lane-dense output: one (1, 1, tile) row per grid step (unmasked vst).
        out_specs=pl.BlockSpec((1, 1, tile), lambda i: (i, 0, 0)),
    )

    out = pl.pallas_call(
        _mlp_kernel,
        out_shape=jax.ShapeDtypeStruct((num_tiles, 1, tile), jnp.float32),
        grid_spec=grid_spec,
        compiler_params=pltpu.CompilerParams(
            # Batch axis is embarrassingly parallel -> megacore / v7x dual-TC sharding.
            dimension_semantics=("parallel",),
            # Headroom for the 2048-row tiles: v5e default scoped VMEM is only 16 MiB.
            vmem_limit_bytes=32 * 1024 * 1024),
    )(x, w1, b1, w2, b2, w3, b3, w4t, b4)

    # (num_tiles, 1, tile) -> (B, 1): an extra lane->sublane relayout over the (tiny,
    # 4 B/row) output; accepted to keep the PyTorch-shaped (B, 1) contract.
    return out.reshape(padded_b, 1)[:B]


def init_params(key, input_dim):
    """Deterministic init mimicking nn.Linear default U(-1/sqrt(fan_in), 1/sqrt(fan_in))."""
    dims = [(input_dim, 256), (256, 128), (128, 64), (64, 1)]
    params = {}
    keys = jax.random.split(key, 2 * len(dims))
    for idx, (fan_in, fan_out) in enumerate(dims):
        bound = 1.0 / jnp.sqrt(jnp.float32(fan_in))
        w = jax.random.uniform(keys[2 * idx], (fan_in, fan_out),
                               minval=-bound, maxval=bound, dtype=jnp.float32)
        # biases kept 2D (1, fan_out) for TPU-friendly broadcasting inside the kernel
        b = jax.random.uniform(keys[2 * idx + 1], (1, fan_out),
                               minval=-bound, maxval=bound, dtype=jnp.float32)
        params[f"w{idx + 1}"] = w
        params[f"b{idx + 1}"] = b
    return params


def _reference_forward(x, p):
    h = jnp.maximum(x @ p["w1"] + p["b1"], 0.0)
    h = jnp.maximum(h @ p["w2"] + p["b2"], 0.0)
    h = jnp.maximum(h @ p["w3"] + p["b3"], 0.0)
    return jax.nn.sigmoid(h @ p["w4"] + p["b4"])


if __name__ == "__main__":
    key = jax.random.PRNGKey(0)
    k_params, k_x = jax.random.split(key)

    batch, input_dim = 8, 32
    params = init_params(k_params, input_dim)
    prepared = prepare_params(params)          # one-time bf16 cast / reshape, outside jit
    x = jax.random.normal(k_x, (batch, input_dim), dtype=jnp.float32)

    # Small batch: tile clamps to 128 rows (not 2048), one grid step, trimmed afterwards.
    out = churn_model_forward(x, prepared)
    out = jax.block_until_ready(out)

    ref = _reference_forward(x, params)
    assert out.shape == (batch, 1)
    # bf16 matmul operands (f32 accumulation) -> looser tolerance than pure-f32.
    assert jnp.allclose(out, ref, atol=2e-2, rtol=2e-2), "mismatch vs pure-JAX reference"

    # Multi-tile / padding path: 1000 rows -> tile=512 -> 2 parallel grid steps (both
    # TensorCores busy on v7x), padded to 1024 and trimmed.
    x2 = jax.random.normal(jax.random.PRNGKey(1), (1000, input_dim), dtype=jnp.float32)
    out2 = jax.block_until_ready(churn_model_forward(x2, prepared))
    ref2 = _reference_forward(x2, params)
    assert out2.shape == (1000, 1)
    assert jnp.allclose(out2, ref2, atol=2e-2, rtol=2e-2), "mismatch vs pure-JAX reference"

    print("KERNEL_OK")
</pallas_src>

<mosaic_0001>
module attributes {stable_mosaic.version = 11 : i64} {
  func.func @_mlp_kernel(%arg0: i32, %arg1: memref<128x32xf32, #tpu.memory_space<vmem>>, %arg2: memref<32x256xbf16, #tpu.memory_space<vmem>>, %arg3: memref<1x256xf32, #tpu.memory_space<vmem>>, %arg4: memref<256x128xbf16, #tpu.memory_space<vmem>>, %arg5: memref<1x128xf32, #tpu.memory_space<vmem>>, %arg6: memref<128x64xbf16, #tpu.memory_space<vmem>>, %arg7: memref<1x64xf32, #tpu.memory_space<vmem>>, %arg8: memref<1x64xbf16, #tpu.memory_space<vmem>>, %arg9: memref<1x1xf32, #tpu.memory_space<vmem>>, %arg10: memref<1x1x128xf32, #tpu.memory_space<vmem>>) attributes {dimension_semantics = [#tpu.dimension_semantics<parallel>], iteration_bounds = array<i64: 1>, scalar_prefetch = 0 : i64, scratch_operands = 0 : i64, tpu.core_type = #tpu.core_type<tc>, window_params = [{transform_indices = @transform_0, window_bounds = array<i64: 128, 32>}, {pipeline_mode = #tpu.pipeline_mode<synchronous>, transform_indices = @transform_1, window_bounds = array<i64: 32, 256>}, {pipeline_mode = #tpu.pipeline_mode<synchronous>, transform_indices = @transform_2, window_bounds = array<i64: 1, 256>}, {pipeline_mode = #tpu.pipeline_mode<synchronous>, transform_indices = @transform_3, window_bounds = array<i64: 256, 128>}, {pipeline_mode = #tpu.pipeline_mode<synchronous>, transform_indices = @transform_4, window_bounds = array<i64: 1, 128>}, {pipeline_mode = #tpu.pipeline_mode<synchronous>, transform_indices = @transform_5, window_bounds = array<i64: 128, 64>}, {pipeline_mode = #tpu.pipeline_mode<synchronous>, transform_indices = @transform_6, window_bounds = array<i64: 1, 64>}, {pipeline_mode = #tpu.pipeline_mode<synchronous>, transform_indices = @transform_7, window_bounds = array<i64: 1, 64>}, {pipeline_mode = #tpu.pipeline_mode<synchronous>, transform_indices = @transform_8, window_bounds = array<i64: 1, 1>}, {transform_indices = @transform_9, window_bounds = array<i64: 1, 1, 128>}]} {
    %c0 = arith.constant 0 : index
    %c0_0 = arith.constant 0 : index
    %0 = vector.load %arg1[%c0, %c0_0] : memref<128x32xf32, #tpu.memory_space<vmem>>, vector<128x32xf32>
    %1 = arith.truncf %0 : vector<128x32xf32> to vector<128x32xbf16>
    %c0_1 = arith.constant 0 : index
    %c0_2 = arith.constant 0 : index
    %2 = vector.load %arg2[%c0_1, %c0_2] : memref<32x256xbf16, #tpu.memory_space<vmem>>, vector<32x256xbf16>
    %cst = arith.constant dense<0.000000e+00> : vector<128x256xf32>
    %3 = tpu.matmul %1, %2, %cst {dimension_numbers = #tpu.dot_dimension_numbers<[1], [0], [0], [1], [0, 0, 1, 1], [], []>} : vector<128x32xbf16>, vector<32x256xbf16>, vector<128x256xf32> -> vector<128x256xf32>
    %c0_3 = arith.constant 0 : index
    %c0_4 = arith.constant 0 : index
    %4 = vector.load %arg3[%c0_3, %c0_4] : memref<1x256xf32, #tpu.memory_space<vmem>>, vector<1x256xf32>
    %5 = vector.broadcast %4 : vector<1x256xf32> to vector<128x256xf32>
    %6 = arith.addf %3, %5 : vector<128x256xf32>
    %cst_5 = arith.constant 0.000000e+00 : f32
    %7 = vector.broadcast %cst_5 : f32 to vector<128x256xf32>
    %8 = arith.maximumf %6, %7 : vector<128x256xf32>
    %9 = arith.truncf %8 : vector<128x256xf32> to vector<128x256xbf16>
    %c0_6 = arith.constant 0 : index
    %c0_7 = arith.constant 0 : index
    %10 = vector.load %arg4[%c0_6, %c0_7] : memref<256x128xbf16, #tpu.memory_space<vmem>>, vector<256x128xbf16>
    %cst_8 = arith.constant dense<0.000000e+00> : vector<128x128xf32>
    %11 = tpu.matmul %9, %10, %cst_8 {dimension_numbers = #tpu.dot_dimension_numbers<[1], [0], [0], [1], [0, 0, 1, 1], [], []>} : vector<128x256xbf16>, vector<256x128xbf16>, vector<128x128xf32> -> vector<128x128xf32>
    %c0_9 = arith.constant 0 : index
    %c0_10 = arith.constant 0 : index
    %12 = vector.load %arg5[%c0_9, %c0_10] : memref<1x128xf32, #tpu.memory_space<vmem>>, vector<1x128xf32>
    %13 = vector.broadcast %12 : vector<1x128xf32> to vector<128x128xf32>
    %14 = arith.addf %11, %13 : vector<128x128xf32>
    %cst_11 = arith.constant 0.000000e+00 : f32
    %15 = vector.broadcast %cst_11 : f32 to vector<128x128xf32>
    %16 = arith.maximumf %14, %15 : vector<128x128xf32>
    %17 = arith.truncf %16 : vector<128x128xf32> to vector<128x128xbf16>
    %c0_12 = arith.constant 0 : index
    %c0_13 = arith.constant 0 : index
    %18 = vector.load %arg6[%c0_12, %c0_13] : memref<128x64xbf16, #tpu.memory_space<vmem>>, vector<128x64xbf16>
    %cst_14 = arith.constant dense<0.000000e+00> : vector<128x64xf32>
    %19 = tpu.matmul %17, %18, %cst_14 {dimension_numbers = #tpu.dot_dimension_numbers<[1], [0], [0], [1], [0, 0, 1, 1], [], []>} : vector<128x128xbf16>, vector<128x64xbf16>, vector<128x64xf32> -> vector<128x64xf32>
    %c0_15 = arith.constant 0 : index
    %c0_16 = arith.constant 0 : index
    %20 = vector.load %arg7[%c0_15, %c0_16] : memref<1x64xf32, #tpu.memory_space<vmem>>, vector<1x64xf32>
    %21 = vector.broadcast %20 : vector<1x64xf32> to vector<128x64xf32>
    %22 = arith.addf %19, %21 : vector<128x64xf32>
    %cst_17 = arith.constant 0.000000e+00 : f32
    %23 = vector.broadcast %cst_17 : f32 to vector<128x64xf32>
    %24 = arith.maximumf %22, %23 : vector<128x64xf32>
    %c0_18 = arith.constant 0 : index
    %c0_19 = arith.constant 0 : index
    %25 = vector.load %arg8[%c0_18, %c0_19] : memref<1x64xbf16, #tpu.memory_space<vmem>>, vector<1x64xbf16>
    %26 = arith.truncf %24 : vector<128x64xf32> to vector<128x64xbf16>
    %cst_20 = arith.constant dense<0.000000e+00> : vector<1x128xf32>
    %27 = tpu.matmul %25, %26, %cst_20 {dimension_numbers = #tpu.dot_dimension_numbers<[1], [1], [0], [0], [0, 0, 1, 0], [], []>} : vector<1x64xbf16>, vector<128x64xbf16>, vector<1x128xf32> -> vector<1x128xf32>
    %c0_21 = arith.constant 0 : index
    %c0_22 = arith.constant 0 : index
    %28 = vector.load %arg9[%c0_21, %c0_22] : memref<1x1xf32, #tpu.memory_space<vmem>>, vector<1x1xf32>
    %29 = vector.broadcast %28 : vector<1x1xf32> to vector<1x128xf32>
    %30 = arith.addf %27, %29 : vector<1x128xf32>
    %31 = arith.negf %30 : vector<1x128xf32>
    %32 = math.exp %31 : vector<1x128xf32>
    %cst_23 = arith.constant 1.000000e+00 : f32
    %33 = vector.broadcast %cst_23 : f32 to vector<1x128xf32>
    %34 = arith.addf %33, %32 : vector<1x128xf32>
    %35 = arith.divf %33, %34 : vector<1x128xf32>
    %c0_24 = arith.constant 0 : index
    %c0_25 = arith.constant 0 : index
    %c0_26 = arith.constant 0 : index
    %36 = vector.load %arg10[%c0_24, %c0_25, %c0_26] : memref<1x1x128xf32, #tpu.memory_space<vmem>>, vector<1x1x128xf32>
    %37 = vector.shape_cast %36 : vector<1x1x128xf32> to vector<1x128xf32>
    %38 = vector.shape_cast %35 : vector<1x128xf32> to vector<1x1x128xf32>
    tpu.vector_store %arg10[%c0_24, %c0_25, %c0_26], %38 {strides = array<i32>} : memref<1x1x128xf32, #tpu.memory_space<vmem>>, vector<1x1x128xf32>,
    return
  }
  func.func @transform_0(%arg0: i32) -> (i32, i32) {
    %c0_i32 = arith.constant 0 : i32
    %c0_i32_0 = arith.constant 0 : i32
    return %arg0, %c0_i32 : i32, i32
  }
  func.func @transform_1(%arg0: i32) -> (i32, i32) {
    %c0_i32 = arith.constant 0 : i32
    %c0_i32_0 = arith.constant 0 : i32
    %c0_i32_1 = arith.constant 0 : i32
    return %c0_i32, %c0_i32_0 : i32, i32
  }
  func.func @transform_2(%arg0: i32) -> (i32, i32) {
    %c0_i32 = arith.constant 0 : i32
    %c0_i32_0 = arith.constant 0 : i32
    %c0_i32_1 = arith.constant 0 : i32
    return %c0_i32, %c0_i32_0 : i32, i32
  }
  func.func @transform_3(%arg0: i32) -> (i32, i32) {
    %c0_i32 = arith.constant 0 : i32
    %c0_i32_0 = arith.constant 0 : i32
    %c0_i32_1 = arith.constant 0 : i32
    return %c0_i32, %c0_i32_0 : i32, i32
  }
  func.func @transform_4(%arg0: i32) -> (i32, i32) {
    %c0_i32 = arith.constant 0 : i32
    %c0_i32_0 = arith.constant 0 : i32
    %c0_i32_1 = arith.constant 0 : i32
    return %c0_i32, %c0_i32_0 : i32, i32
  }
  func.func @transform_5(%arg0: i32) -> (i32, i32) {
    %c0_i32 = arith.constant 0 : i32
    %c0_i32_0 = arith.constant 0 : i32
    %c0_i32_1 = arith.constant 0 : i32
    return %c0_i32, %c0_i32_0 : i32, i32
  }
  func.func @transform_6(%arg0: i32) -> (i32, i32) {
    %c0_i32 = arith.constant 0 : i32
    %c0_i32_0 = arith.constant 0 : i32
    %c0_i32_1 = arith.constant 0 : i32
    return %c0_i32, %c0_i32_0 : i32, i32
  }
  func.func @transform_7(%arg0: i32) -> (i32, i32) {
    %c0_i32 = arith.constant 0 : i32
    %c0_i32_0 = arith.constant 0 : i32
    %c0_i32_1 = arith.constant 0 : i32
    return %c0_i32, %c0_i32_0 : i32, i32
  }
  func.func @transform_8(%arg0: i32) -> (i32, i32) {
    %c0_i32 = arith.constant 0 : i32
    %c0_i32_0 = arith.constant 0 : i32
    %c0_i32_1 = arith.constant 0 : i32
    return %c0_i32, %c0_i32_0 : i32, i32
  }
  func.func @transform_9(%arg0: i32) -> (i32, i32, i32) {
    %c0_i32 = arith.constant 0 : i32
    %c0_i32_0 = arith.constant 0 : i32
    %c0_i32_1 = arith.constant 0 : i32
    return %arg0, %c0_i32, %c0_i32_0 : i32, i32, i32
  }
}

</mosaic_0001>

<llo_original>
// kernel: churn_model_forward.1
$region0: #{churn_model_forward.1}
  #allocation0 [shape = 'u32[]', space=smem, size = 0x4, offset = 0x4, fixed_abs, tag = 'smem constant byte address 0x4 - core index']
  #allocation1 [shape = 'u32[144,128]{1,0:T(1,128)}', space=vmem, size = 0x12000, scoped, tag = 'internal scratch']
  #allocation2 [shape = 'f32[1,1]{1,0:T(1,128)S(1)}', space=vmem, size = 0x200, scoped, tag = 'scoped memory for churn_model_forward.1']
  %s0 = inlined_call_operand.vmem [shape: f32[128,32], index: 0, kind: input, shape index: {}]
  %s1 = inlined_call_operand.vmem [shape: bf16[32,256], index: 1, kind: input, shape index: {}]
  %s2 = inlined_call_operand.vmem [shape: f32[1,256], index: 2, kind: input, shape index: {}]
  %s3 = inlined_call_operand.vmem [shape: bf16[256,128], index: 3, kind: input, shape index: {}]
  %s4 = inlined_call_operand.vmem [shape: f32[1,128], index: 4, kind: input, shape index: {}]
  %s5 = inlined_call_operand.vmem [shape: bf16[128,64], index: 5, kind: input, shape index: {}]
  %s6 = inlined_call_operand.vmem [shape: f32[1,64], index: 6, kind: input, shape index: {}]
  %s7 = inlined_call_operand.vmem [shape: bf16[1,64], index: 7, kind: input, shape index: {}]
  %s8 = inlined_call_operand.<no memory space> [shape: f32[1,1], index: 8, kind: input, shape index: {}]
  %s9 = inlined_call_operand.vmem [shape: f32[1,1,128], index: 9, kind: output, shape index: {}]
  %s10 = sld [smem:[#allocation0]]
  $region46: #{churn_model_forward.1} parent=0
    _
  %s12 = ssub.s32 1, %s10
  %s13 = scalar_select 0, %s12, %s10
  %v14 = vstv %s8
  %15 = vst [vmem:[#allocation2] sm:$0x1] %v14
  // Predicated region
  $region2: #{churn_model_forward.1} parent=0 // pred_check
    _
  $region3: #{churn_model_forward.1} parent=0 // pred_check_branch
    %17 = sbr.rel (0) target = $region5
  $region4: #{churn_model_forward.1} parent=0 // pred_region
    _
  $region5: #{churn_model_forward.1} parent=0 // pred_fallthru
    _
  // Predicated region
  $region6: #{churn_model_forward.1} parent=0 // pred_check
    _
  $region7: #{churn_model_forward.1} parent=0 // pred_check_branch
    %19 = sbr.rel (0) target = $region9
  $region8: #{churn_model_forward.1} parent=0 // pred_region
    _
  $region9: #{churn_model_forward.1} parent=0 // pred_fallthru
    _
  // Predicated region
  $region10: #{churn_model_forward.1} parent=0 // pred_check
    _
  $region11: #{churn_model_forward.1} parent=0 // pred_check_branch
    %21 = sbr.rel (0) target = $region13
  $region12: #{churn_model_forward.1} parent=0 // pred_region
    _
  $region13: #{churn_model_forward.1} parent=0 // pred_fallthru
    _
  // Predicated region
  $region14: #{churn_model_forward.1} parent=0 // pred_check
    _
  $region15: #{churn_model_forward.1} parent=0 // pred_check_branch
    %23 = sbr.rel (0) target = $region17
  $region16: #{churn_model_forward.1} parent=0 // pred_region
    _
  $region17: #{churn_model_forward.1} parent=0 // pred_fallthru
    _
  // Predicated region
  $region18: #{churn_model_forward.1} parent=0 // pred_check
    _
  $region19: #{churn_model_forward.1} parent=0 // pred_check_branch
    %25 = sbr.rel (0) target = $region21
  $region20: #{churn_model_forward.1} parent=0 // pred_region
    _
  $region21: #{churn_model_forward.1} parent=0 // pred_fallthru
    _
  // Predicated region
  $region22: #{churn_model_forward.1} parent=0 // pred_check
    _
  $region23: #{churn_model_forward.1} parent=0 // pred_check_branch
    %27 = sbr.rel (0) target = $region25
  $region24: #{churn_model_forward.1} parent=0 // pred_region
    _
  $region25: #{churn_model_forward.1} parent=0 // pred_fallthru
    _
  // Predicated region
  $region26: #{churn_model_forward.1} parent=0 // pred_check
    _
  $region27: #{churn_model_forward.1} parent=0 // pred_check_branch
    %29 = sbr.rel (0) target = $region29
  $region28: #{churn_model_forward.1} parent=0 // pred_region
    _
  $region29: #{churn_model_forward.1} parent=0 // pred_fallthru
    _
  // Predicated region
  $region30: #{churn_model_forward.1} parent=0 // pred_check
    _
  $region31: #{churn_model_forward.1} parent=0 // pred_check_branch
    %31 = sbr.rel (0) target = $region33
  $region32: #{churn_model_forward.1} parent=0 // pred_region
    _
  $region33: #{churn_model_forward.1} parent=0 // pred_fallthru
    _
  // Predicated region
  $region34: #{churn_model_forward.1} parent=0 // pred_check
    _
  $region35: #{churn_model_forward.1} parent=0 // pred_check_branch
    %33 = sbr.rel (0) target = $region37
  $region36: #{churn_model_forward.1} parent=0 // pred_region
    _
  $region37: #{churn_model_forward.1} parent=0 // pred_fallthru
    _
  %v35 = vld [vmem:[%s0] sm:$0xff]
  %v36 = vld [vmem:[%s0 + $0x8] sm:$0xff]
  %v37 = vld [vmem:[%s0 + $0x10] sm:$0xff]
  %v38 = vld [vmem:[%s0 + $0x18] sm:$0xff]
  %v39 = vld [vmem:[%s0 + $0x20] sm:$0xff]
  %v40 = vld [vmem:[%s0 + $0x28] sm:$0xff]
  %v41 = vld [vmem:[%s0 + $0x30] sm:$0xff]
  %v42 = vld [vmem:[%s0 + $0x38] sm:$0xff]
  %v43 = vld [vmem:[%s0 + $0x40] sm:$0xff]
  %v44 = vld [vmem:[%s0 + $0x48] sm:$0xff]
  %v45 = vld [vmem:[%s0 + $0x50] sm:$0xff]
  %v46 = vld [vmem:[%s0 + $0x58] sm:$0xff]
  %v47 = vld [vmem:[%s0 + $0x60] sm:$0xff]
  %v48 = vld [vmem:[%s0 + $0x68] sm:$0xff]
  %v49 = vld [vmem:[%s0 + $0x70] sm:$0xff]
  %v50 = vld [vmem:[%s0 + $0x78] sm:$0xff]
  %v51 = vpack.c.bf16 %v36, %v35
  %v52 = vpack.c.bf16 %v38, %v37
  %v53 = vpack.c.bf16 %v40, %v39
  %v54 = vpack.c.bf16 %v42, %v41
  %v55 = vpack.c.bf16 %v44, %v43
  %v56 = vpack.c.bf16 %v46, %v45
  %v57 = vpack.c.bf16 %v48, %v47
  %v58 = vpack.c.bf16 %v50, %v49
  %v59 = vld [vmem:[%s1] sm:$0xff]
  %v60 = vld [vmem:[%s1 + $0x8] sm:$0xff]
  %v61 = vld [vmem:[%s1 + $0x10] sm:$0xff]
  %v62 = vld [vmem:[%s1 + $0x18] sm:$0xff]
  %v63 = vld [vmem:[%s2] sm:$0x3]
  %v65 = vlaneseq
  %v66 = vshrl.u32 %v65, 7
  %v67 = vsub.s32 0, %v66
  %v68 = vrot.slane %v63, %v67
  %v69 = vlaneseq
  %v70 = vshrl.u32 %v69, 7
  %v71 = vsub.s32 1, %v70
  %v72 = vrot.slane %v63, %v71
  %v79 = vunpack.c.l.b16 %v59
  %v80 = vunpack.c.h.b16 %v59
  %v81 = vunpack.c.l.b16 %v60
  %v82 = vunpack.c.h.b16 %v60
  %v83 = vunpack.c.l.b16 %v61
  %v84 = vunpack.c.h.b16 %v61
  %v85 = vunpack.c.l.b16 %v62
  %v86 = vunpack.c.h.b16 %v62
  %v87 = vpack.c.b16 %v81, %v79
  %v88 = vpack.c.b16 %v82, %v80
  %v89 = vpack.c.b16 %v85, %v83
  %v90 = vpack.c.b16 %v86, %v84
  %vm95 = vcmask 261120
  %v97 = vsel %vm95, %v51, 0
  %v100 = vsel %vm95, %v52, 0
  %v103 = vsel %vm95, %v53, 0
  %v106 = vsel %vm95, %v54, 0
  %v109 = vsel %vm95, %v55, 0
  %v112 = vsel %vm95, %v56, 0
  %v115 = vsel %vm95, %v57, 0
  %v118 = vsel %vm95, %v58, 0
  %120 = vmatprep.subr.bf16.mxu0 0
  %121 = vmatpush1.bf16.msra.mxu0 0
  %122 = vmatprep.subr.bf16.mxu0 0
  %123 = vmatpush1.bf16.msra.mxu0 0
  %124 = vmatprep.subr.bf16.mxu0 0
  %125 = vmatpush1.bf16.msra.mxu0 0
  %126 = vmatprep.subr.bf16.mxu0 0
  %127 = vmatpush1.bf16.msra.mxu0 0
  %128 = vmatprep.subr.bf16.mxu0 0
  %129 = vmatpush1.bf16.msra.mxu0 0
  %130 = vmatprep.subr.bf16.mxu0 0
  %131 = vmatpush1.bf16.msra.mxu0 0
  %132 = vmatprep.subr.bf16.mxu0 %v90
  %133 = vmatpush1.bf16.msra.mxu0 %v89
  %134 = vmatprep.subr.bf16.mxu0 %v88
  %135 = vmatpush1.bf16.msra.mxu0 %v87
  %136 = vmatprep.subr.bf16.mxu0 0
  %137 = vmatpush2.bf16.msra.mxu0 0
  %138 = vmatprep.subr.bf16.mxu0 0
  %139 = vmatpush2.bf16.msra.mxu0 0
  %140 = vmatprep.subr.bf16.mxu0 0
  %141 = vmatpush2.bf16.msra.mxu0 0
  %142 = vmatprep.subr.bf16.mxu0 0
  %143 = vmatpush2.bf16.msra.mxu0 0
  %144 = vmatprep.subr.bf16.mxu0 0
  %145 = vmatpush2.bf16.msra.mxu0 0
  %146 = vmatprep.subr.bf16.mxu0 0
  %147 = vmatpush2.bf16.msra.mxu0 0
  %148 = vmatprep.subr.bf16.mxu0 0
  %149 = vmatpush2.bf16.msra.mxu0 0
  %150 = vmatprep.subr.bf16.mxu0 0
  %151 = vmatpush2.bf16.msra.mxu0 0
  %152 = vmatprep.mubr.bf16.mxu0 0
  %153 = vmatmul.mubr.bf16.gmra.mxu0 %v97
  %v154 = vpop.f32.mrf.mxu0
  %v155 = vadd.f32 %v68, %v154
  %v156 = vpop.f32.mrf.mxu0
  %v157 = vadd.f32 %v72, %v156
  %v158 = vpop.f32.mrf.mxu0
  %v159 = vadd.f32 %v68, %v158
  %v160 = vpop.f32.mrf.mxu0
  %v161 = vadd.f32 %v72, %v160
  %162 = vmatprep.mubr.bf16.mxu0 0
  %163 = vmatmul.mubr.bf16.gmra.mxu0 %v100
  %v164 = vpop.f32.mrf.mxu0
  %v165 = vadd.f32 %v68, %v164
  %v166 = vpop.f32.mrf.mxu0
  %v167 = vadd.f32 %v72, %v166
  %v168 = vpop.f32.mrf.mxu0
  %v169 = vadd.f32 %v68, %v168
  %v170 = vpop.f32.mrf.mxu0
  %v171 = vadd.f32 %v72, %v170
  %172 = vmatprep.mubr.bf16.mxu0 0
  %173 = vmatmul.mubr.bf16.gmra.mxu0 %v103
  %v174 = vpop.f32.mrf.mxu0
  %v175 = vadd.f32 %v68, %v174
  %v176 = vpop.f32.mrf.mxu0
  %v177 = vadd.f32 %v72, %v176
  %v178 = vpop.f32.mrf.mxu0
  %v179 = vadd.f32 %v68, %v178
  %v180 = vpop.f32.mrf.mxu0
  %v181 = vadd.f32 %v72, %v180
  %182 = vmatprep.mubr.bf16.mxu0 0
  %183 = vmatmul.mubr.bf16.gmra.mxu0 %v106
  %v184 = vpop.f32.mrf.mxu0
  %v185 = vadd.f32 %v68, %v184
  %v186 = vpop.f32.mrf.mxu0
  %v187 = vadd.f32 %v72, %v186
  %v188 = vpop.f32.mrf.mxu0
  %v189 = vadd.f32 %v68, %v188
  %v190 = vpop.f32.mrf.mxu0
  %v191 = vadd.f32 %v72, %v190
  %192 = vmatprep.mubr.bf16.mxu0 0
  %193 = vmatmul.mubr.bf16.gmra.mxu0 %v109
  %v194 = vpop.f32.mrf.mxu0
  %v195 = vadd.f32 %v68, %v194
  %v196 = vpop.f32.mrf.mxu0
  %v197 = vadd.f32 %v72, %v196
  %v198 = vpop.f32.mrf.mxu0
  %v199 = vadd.f32 %v68, %v198
  %v200 = vpop.f32.mrf.mxu0
  %v201 = vadd.f32 %v72, %v200
  %202 = vmatprep.mubr.bf16.mxu0 0
  %203 = vmatmul.mubr.bf16.gmra.mxu0 %v112
  %v204 = vpop.f32.mrf.mxu0
  %v205 = vadd.f32 %v68, %v204
  %v206 = vpop.f32.mrf.mxu0
  %v207 = vadd.f32 %v72, %v206
  %v208 = vpop.f32.mrf.mxu0
  %v209 = vadd.f32 %v68, %v208
  %v210 = vpop.f32.mrf.mxu0
  %v211 = vadd.f32 %v72, %v210
  %212 = vmatprep.mubr.bf16.mxu0 0
  %213 = vmatmul.mubr.bf16.gmra.mxu0 %v115
  %v214 = vpop.f32.mrf.mxu0
  %v215 = vadd.f32 %v68, %v214
  %v216 = vpop.f32.mrf.mxu0
  %v217 = vadd.f32 %v72, %v216
  %v218 = vpop.f32.mrf.mxu0
  %v219 = vadd.f32 %v68, %v218
  %v220 = vpop.f32.mrf.mxu0
  %v221 = vadd.f32 %v72, %v220
  %222 = vmatprep.mubr.bf16.mxu0 0
  %223 = vmatmul.mubr.bf16.gmra.mxu0 %v118
  %v224 = vpop.f32.mrf.mxu0
  %v225 = vadd.f32 %v68, %v224
  %v226 = vpop.f32.mrf.mxu0
  %v227 = vadd.f32 %v72, %v226
  %v228 = vpop.f32.mrf.mxu0
  %v229 = vadd.f32 %v68, %v228
  %v230 = vpop.f32.mrf.mxu0
  %v231 = vadd.f32 %v72, %v230
  %232 = vdwg.mxu0
  %v233 = vmax.f32 %v155, 0.0
  %v234 = vmax.f32 %v157, 0.0
  %v235 = vmax.f32 %v159, 0.0
  %v236 = vmax.f32 %v161, 0.0
  %v237 = vmax.f32 %v165, 0.0
  %v238 = vmax.f32 %v167, 0.0
  %v239 = vmax.f32 %v169, 0.0
  %v240 = vmax.f32 %v171, 0.0
  %v241 = vmax.f32 %v175, 0.0
  %v242 = vmax.f32 %v177, 0.0
  %v243 = vmax.f32 %v179, 0.0
  %v244 = vmax.f32 %v181, 0.0
  %v245 = vmax.f32 %v185, 0.0
  %v246 = vmax.f32 %v187, 0.0
  %v247 = vmax.f32 %v189, 0.0
  %v248 = vmax.f32 %v191, 0.0
  %v249 = vmax.f32 %v195, 0.0
  %v250 = vmax.f32 %v197, 0.0
  %v251 = vmax.f32 %v199, 0.0
  %v252 = vmax.f32 %v201, 0.0
  %v253 = vmax.f32 %v205, 0.0
  %v254 = vmax.f32 %v207, 0.0
  %v255 = vmax.f32 %v209, 0.0
  %v256 = vmax.f32 %v211, 0.0
  %v257 = vmax.f32 %v215, 0.0
  %v258 = vmax.f32 %v217, 0.0
  %v259 = vmax.f32 %v219, 0.0
  %v260 = vmax.f32 %v221, 0.0
  %v261 = vmax.f32 %v225, 0.0
  %v262 = vmax.f32 %v227, 0.0
  %v263 = vmax.f32 %v229, 0.0
  %v264 = vmax.f32 %v231, 0.0
  %v265 = vpack.c.bf16 %v235, %v233
  %v266 = vpack.c.bf16 %v236, %v234
  %v267 = vpack.c.bf16 %v239, %v237
  %v268 = vpack.c.bf16 %v240, %v238
  %v269 = vpack.c.bf16 %v243, %v241
  %v270 = vpack.c.bf16 %v244, %v242
  %v271 = vpack.c.bf16 %v247, %v245
  %v272 = vpack.c.bf16 %v248, %v246
  %v273 = vpack.c.bf16 %v251, %v249
  %v274 = vpack.c.bf16 %v252, %v250
  %v275 = vpack.c.bf16 %v255, %v253
  %v276 = vpack.c.bf16 %v256, %v254
  %v277 = vpack.c.bf16 %v259, %v257
  %v278 = vpack.c.bf16 %v260, %v258
  %v279 = vpack.c.bf16 %v263, %v261
  %v280 = vpack.c.bf16 %v264, %v262
  %v281 = vld [vmem:[%s3] sm:$0xf]
  %v282 = vld [vmem:[%s3 + $0x4] sm:$0xf]
  %v283 = vld [vmem:[%s3 + $0x8] sm:$0xf]
  %v284 = vld [vmem:[%s3 + $0xc] sm:$0xf]
  %v285 = vld [vmem:[%s3 + $0x10] sm:$0xf]
  %v286 = vld [vmem:[%s3 + $0x14] sm:$0xf]
  %v287 = vld [vmem:[%s3 + $0x18] sm:$0xf]
  %v288 = vld [vmem:[%s3 + $0x1c] sm:$0xf]
  %v289 = vld [vmem:[%s3 + $0x20] sm:$0xf]
  %v290 = vld [vmem:[%s3 + $0x24] sm:$0xf]
  %v291 = vld [vmem:[%s3 + $0x28] sm:$0xf]
  %v292 = vld [vmem:[%s3 + $0x2c] sm:$0xf]
  %v293 = vld [vmem:[%s3 + $0x30] sm:$0xf]
  %v294 = vld [vmem:[%s3 + $0x34] sm:$0xf]
  %v295 = vld [vmem:[%s3 + $0x38] sm:$0xf]
  %v296 = vld [vmem:[%s3 + $0x3c] sm:$0xf]
  %v297 = vld [vmem:[%s3 + $0x40] sm:$0xf]
  %v298 = vld [vmem:[%s3 + $0x44] sm:$0xf]
  %v299 = vld [vmem:[%s3 + $0x48] sm:$0xf]
  %v300 = vld [vmem:[%s3 + $0x4c] sm:$0xf]
  %v301 = vld [vmem:[%s3 + $0x50] sm:$0xf]
  %v302 = vld [vmem:[%s3 + $0x54] sm:$0xf]
  %v303 = vld [vmem:[%s3 + $0x58] sm:$0xf]
  %v304 = vld [vmem:[%s3 + $0x5c] sm:$0xf]
  %v305 = vld [vmem:[%s3 + $0x60] sm:$0xf]
  %v306 = vld [vmem:[%s3 + $0x64] sm:$0xf]
  %v307 = vld [vmem:[%s3 + $0x68] sm:$0xf]
  %v308 = vld [vmem:[%s3 + $0x6c] sm:$0xf]
  %v309 = vld [vmem:[%s3 + $0x70] sm:$0xf]
  %v310 = vld [vmem:[%s3 + $0x74] sm:$0xf]
  %v311 = vld [vmem:[%s3 + $0x78] sm:$0xf]
  %v312 = vld [vmem:[%s3 + $0x7c] sm:$0xf]
  %v313 = vld [vmem:[%s4] sm:$0x1]
  %v315 = vlaneseq
  %v316 = vshrl.u32 %v315, 7
  %v317 = vsub.s32 0, %v316
  %v318 = vrot.slane %v313, %v317
  %v352 = vunpack.c.l.b16 %v281
  %v353 = vunpack.c.l.b16 %v282
  %v354 = vunpack.c.l.b16 %v283
  %v355 = vunpack.c.l.b16 %v284
  %v356 = vunpack.c.l.b16 %v285
  %v357 = vunpack.c.l.b16 %v286
  %v358 = vunpack.c.l.b16 %v287
  %v359 = vunpack.c.l.b16 %v288
  %v360 = vunpack.c.l.b16 %v289
  %v361 = vunpack.c.l.b16 %v290
  %v362 = vunpack.c.l.b16 %v291
  %v363 = vunpack.c.l.b16 %v292
  %v364 = vunpack.c.l.b16 %v293
  %v365 = vunpack.c.l.b16 %v294
  %v366 = vunpack.c.l.b16 %v295
  %v367 = vunpack.c.l.b16 %v296
  %v368 = vunpack.c.l.b16 %v297
  %v369 = vunpack.c.l.b16 %v298
  %v370 = vunpack.c.l.b16 %v299
  %v371 = vunpack.c.l.b16 %v300
  %v372 = vunpack.c.l.b16 %v301
  %v373 = vunpack.c.l.b16 %v302
  %v374 = vunpack.c.l.b16 %v303
  %v375 = vunpack.c.l.b16 %v304
  %v376 = vunpack.c.l.b16 %v305
  %v377 = vunpack.c.l.b16 %v306
  %v378 = vunpack.c.l.b16 %v307
  %v379 = vunpack.c.l.b16 %v308
  %v380 = vunpack.c.l.b16 %v309
  %v381 = vunpack.c.l.b16 %v310
  %v382 = vunpack.c.l.b16 %v311
  %v383 = vunpack.c.l.b16 %v312
  %v384 = vpack.c.b16 %v353, %v352
  %v385 = vpack.c.b16 %v355, %v354
  %v386 = vpack.c.b16 %v357, %v356
  %v387 = vpack.c.b16 %v359, %v358
  %v388 = vpack.c.b16 %v361, %v360
  %v389 = vpack.c.b16 %v363, %v362
  %v390 = vpack.c.b16 %v365, %v364
  %v391 = vpack.c.b16 %v367, %v366
  %v392 = vpack.c.b16 %v369, %v368
  %v393 = vpack.c.b16 %v371, %v370
  %v394 = vpack.c.b16 %v373, %v372
  %v395 = vpack.c.b16 %v375, %v374
  %v396 = vpack.c.b16 %v377, %v376
  %v397 = vpack.c.b16 %v379, %v378
  %v398 = vpack.c.b16 %v381, %v380
  %v399 = vpack.c.b16 %v383, %v382
  %416 = vmatprep.subr.bf16.mxu0 0
  %417 = vmatpush1.bf16.msra.mxu0 %v391
  %418 = vmatprep.subr.bf16.mxu0 0
  %419 = vmatpush1.bf16.msra.mxu0 %v390
  %420 = vmatprep.subr.bf16.mxu0 0
  %421 = vmatpush1.bf16.msra.mxu0 %v389
  %422 = vmatprep.subr.bf16.mxu0 0
  %423 = vmatpush1.bf16.msra.mxu0 %v388
  %424 = vmatprep.subr.bf16.mxu0 0
  %425 = vmatpush1.bf16.msra.mxu0 %v387
  %426 = vmatprep.subr.bf16.mxu0 0
  %427 = vmatpush1.bf16.msra.mxu0 %v386
  %428 = vmatprep.subr.bf16.mxu0 0
  %429 = vmatpush1.bf16.msra.mxu0 %v385
  %430 = vmatprep.subr.bf16.mxu0 0
  %431 = vmatpush1.bf16.msra.mxu0 %v384
  %432 = vmatprep.subr.bf16.mxu0 0
  %433 = vmatpush2.bf16.msra.mxu0 %v399
  %434 = vmatprep.subr.bf16.mxu0 0
  %435 = vmatpush2.bf16.msra.mxu0 %v398
  %436 = vmatprep.subr.bf16.mxu0 0
  %437 = vmatpush2.bf16.msra.mxu0 %v397
  %438 = vmatprep.subr.bf16.mxu0 0
  %439 = vmatpush2.bf16.msra.mxu0 %v396
  %440 = vmatprep.subr.bf16.mxu0 0
  %441 = vmatpush2.bf16.msra.mxu0 %v395
  %442 = vmatprep.subr.bf16.mxu0 0
  %443 = vmatpush2.bf16.msra.mxu0 %v394
  %444 = vmatprep.subr.bf16.mxu0 0
  %445 = vmatpush2.bf16.msra.mxu0 %v393
  %446 = vmatprep.subr.bf16.mxu0 0
  %447 = vmatpush2.bf16.msra.mxu0 %v392
  %448 = vmatprep.mubr.bf16.mxu0 %v266
  %449 = vmatmul.mubr.bf16.gmra.mxu0 %v265
  %v450 = vpop.f32.mrf.mxu0
  %v451 = vadd.f32 %v318, %v450
  %v452 = vpop.f32.mrf.mxu0
  %v453 = vpop.f32.mrf.mxu0
  %v454 = vadd.f32 %v318, %v453
  %v455 = vpop.f32.mrf.mxu0
  %456 = vmatprep.mubr.bf16.mxu0 %v268
  %457 = vmatmul.mubr.bf16.gmra.mxu0 %v267
  %v458 = vpop.f32.mrf.mxu0
  %v459 = vadd.f32 %v318, %v458
  %v460 = vpop.f32.mrf.mxu0
  %v461 = vpop.f32.mrf.mxu0
  %v462 = vadd.f32 %v318, %v461
  %v463 = vpop.f32.mrf.mxu0
  %464 = vmatprep.mubr.bf16.mxu0 %v270
  %465 = vmatmul.mubr.bf16.gmra.mxu0 %v269
  %v466 = vpop.f32.mrf.mxu0
  %v467 = vadd.f32 %v318, %v466
  %v468 = vpop.f32.mrf.mxu0
  %v469 = vpop.f32.mrf.mxu0
  %v470 = vadd.f32 %v318, %v469
  %v471 = vpop.f32.mrf.mxu0
  %472 = vmatprep.mubr.bf16.mxu0 %v272
  %473 = vmatmul.mubr.bf16.gmra.mxu0 %v271
  %v474 = vpop.f32.mrf.mxu0
  %v475 = vadd.f32 %v318, %v474
  %v476 = vpop.f32.mrf.mxu0
  %v477 = vpop.f32.mrf.mxu0
  %v478 = vadd.f32 %v318, %v477
  %v479 = vpop.f32.mrf.mxu0
  %480 = vmatprep.mubr.bf16.mxu0 %v274
  %481 = vmatmul.mubr.bf16.gmra.mxu0 %v273
  %v482 = vpop.f32.mrf.mxu0
  %v483 = vadd.f32 %v318, %v482
  %v484 = vpop.f32.mrf.mxu0
  %v485 = vpop.f32.mrf.mxu0
  %v486 = vadd.f32 %v318, %v485
  %v487 = vpop.f32.mrf.mxu0
  %488 = vmatprep.mubr.bf16.mxu0 %v276
  %489 = vmatmul.mubr.bf16.gmra.mxu0 %v275
  %v490 = vpop.f32.mrf.mxu0
  %v491 = vadd.f32 %v318, %v490
  %v492 = vpop.f32.mrf.mxu0
  %v493 = vpop.f32.mrf.mxu0
  %v494 = vadd.f32 %v318, %v493
  %v495 = vpop.f32.mrf.mxu0
  %496 = vmatprep.mubr.bf16.mxu0 %v278
  %497 = vmatmul.mubr.bf16.gmra.mxu0 %v277
  %v498 = vpop.f32.mrf.mxu0
  %v499 = vadd.f32 %v318, %v498
  %v500 = vpop.f32.mrf.mxu0
  %v501 = vpop.f32.mrf.mxu0
  %v502 = vadd.f32 %v318, %v501
  %v503 = vpop.f32.mrf.mxu0
  %504 = vmatprep.mubr.bf16.mxu0 %v280
  %505 = vmatmul.mubr.bf16.gmra.mxu0 %v279
  %v506 = vpop.f32.mrf.mxu0
  %v507 = vadd.f32 %v318, %v506
  %v508 = vpop.f32.mrf.mxu0
  %v509 = vpop.f32.mrf.mxu0
  %v510 = vadd.f32 %v318, %v509
  %v511 = vpop.f32.mrf.mxu0
  %512 = vdwg.mxu0
  %v513 = vmax.f32 %v451, 0.0
  %v514 = vmax.f32 %v454, 0.0
  %v515 = vmax.f32 %v459, 0.0
  %v516 = vmax.f32 %v462, 0.0
  %v517 = vmax.f32 %v467, 0.0
  %v518 = vmax.f32 %v470, 0.0
  %v519 = vmax.f32 %v475, 0.0
  %v520 = vmax.f32 %v478, 0.0
  %v521 = vmax.f32 %v483, 0.0
  %v522 = vmax.f32 %v486, 0.0
  %v523 = vmax.f32 %v491, 0.0
  %v524 = vmax.f32 %v494, 0.0
  %v525 = vmax.f32 %v499, 0.0
  %v526 = vmax.f32 %v502, 0.0
  %v527 = vmax.f32 %v507, 0.0
  %v528 = vmax.f32 %v510, 0.0
  %v529 = vpack.c.bf16 %v514, %v513
  %v530 = vpack.c.bf16 %v516, %v515
  %v531 = vpack.c.bf16 %v518, %v517
  %v532 = vpack.c.bf16 %v520, %v519
  %v533 = vpack.c.bf16 %v522, %v521
  %v534 = vpack.c.bf16 %v524, %v523
  %v535 = vpack.c.bf16 %v526, %v525
  %v536 = vpack.c.bf16 %v528, %v527
  %v537 = vld [vmem:[%s5] sm:$0xf]
  %v538 = vld [vmem:[%s5 + $0x4] sm:$0xf]
  %v539 = vld [vmem:[%s5 + $0x8] sm:$0xf]
  %v540 = vld [vmem:[%s5 + $0xc] sm:$0xf]
  %v541 = vld [vmem:[%s5 + $0x10] sm:$0xf]
  %v542 = vld [vmem:[%s5 + $0x14] sm:$0xf]
  %v543 = vld [vmem:[%s5 + $0x18] sm:$0xf]
  %v544 = vld [vmem:[%s5 + $0x1c] sm:$0xf]
  %v545 = vld [vmem:[%s5 + $0x20] sm:$0xf]
  %v546 = vld [vmem:[%s5 + $0x24] sm:$0xf]
  %v547 = vld [vmem:[%s5 + $0x28] sm:$0xf]
  %v548 = vld [vmem:[%s5 + $0x2c] sm:$0xf]
  %v549 = vld [vmem:[%s5 + $0x30] sm:$0xf]
  %v550 = vld [vmem:[%s5 + $0x34] sm:$0xf]
  %v551 = vld [vmem:[%s5 + $0x38] sm:$0xf]
  %v552 = vld [vmem:[%s5 + $0x3c] sm:$0xf]
  %v553 = vld [vmem:[%s6] sm:$0x1]
  %v555 = vlaneseq
  %v556 = vshrl.u32 %v555, 7
  %v557 = vsub.s32 0, %v556
  %v558 = vrot.slane %v553, %v557
  %v576 = vunpack.c.l.b16 %v537
  %v577 = vunpack.c.l.b16 %v538
  %v578 = vunpack.c.l.b16 %v539
  %v579 = vunpack.c.l.b16 %v540
  %v580 = vunpack.c.l.b16 %v541
  %v581 = vunpack.c.l.b16 %v542
  %v582 = vunpack.c.l.b16 %v543
  %v583 = vunpack.c.l.b16 %v544
  %v584 = vunpack.c.l.b16 %v545
  %v585 = vunpack.c.l.b16 %v546
  %v586 = vunpack.c.l.b16 %v547
  %v587 = vunpack.c.l.b16 %v548
  %v588 = vunpack.c.l.b16 %v549
  %v589 = vunpack.c.l.b16 %v550
  %v590 = vunpack.c.l.b16 %v551
  %v591 = vunpack.c.l.b16 %v552
  %v592 = vpack.c.b16 %v577, %v576
  %v593 = vpack.c.b16 %v579, %v578
  %v594 = vpack.c.b16 %v581, %v580
  %v595 = vpack.c.b16 %v583, %v582
  %v596 = vpack.c.b16 %v585, %v584
  %v597 = vpack.c.b16 %v587, %v586
  %v598 = vpack.c.b16 %v589, %v588
  %v599 = vpack.c.b16 %v591, %v590
  %608 = vmatprep.subr.bf16.mxu0 0
  %609 = vmatpush1.bf16.msra.mxu0 %v599
  %610 = vmatprep.subr.bf16.mxu0 0
  %611 = vmatpush1.bf16.msra.mxu0 %v598
  %612 = vmatprep.subr.bf16.mxu0 0
  %613 = vmatpush1.bf16.msra.mxu0 %v597
  %614 = vmatprep.subr.bf16.mxu0 0
  %615 = vmatpush1.bf16.msra.mxu0 %v596
  %616 = vmatprep.subr.bf16.mxu0 0
  %617 = vmatpush1.bf16.msra.mxu0 %v595
  %618 = vmatprep.subr.bf16.mxu0 0
  %619 = vmatpush1.bf16.msra.mxu0 %v594
  %620 = vmatprep.subr.bf16.mxu0 0
  %621 = vmatpush1.bf16.msra.mxu0 %v593
  %622 = vmatprep.subr.bf16.mxu0 0
  %623 = vmatpush1.bf16.msra.mxu0 %v592
  %624 = vmatprep.subr.bf16.mxu0 0
  %625 = vmatpush2.bf16.msra.mxu0 0
  %626 = vmatprep.subr.bf16.mxu0 0
  %627 = vmatpush2.bf16.msra.mxu0 0
  %628 = vmatprep.subr.bf16.mxu0 0
  %629 = vmatpush2.bf16.msra.mxu0 0
  %630 = vmatprep.subr.bf16.mxu0 0
  %631 = vmatpush2.bf16.msra.mxu0 0
  %632 = vmatprep.subr.bf16.mxu0 0
  %633 = vmatpush2.bf16.msra.mxu0 0
  %634 = vmatprep.subr.bf16.mxu0 0
  %635 = vmatpush2.bf16.msra.mxu0 0
  %636 = vmatprep.subr.bf16.mxu0 0
  %637 = vmatpush2.bf16.msra.mxu0 0
  %638 = vmatprep.subr.bf16.mxu0 0
  %639 = vmatpush2.bf16.msra.mxu0 0
  %640 = vmatprep.mubr.bf16.mxu0 0
  %641 = vmatmul.mubr.bf16.gmra.mxu0 %v529
  %v642 = vpop.f32.mrf.mxu0
  %v643 = vadd.f32 %v558, %v642
  %v644 = vpop.f32.mrf.mxu0
  %v645 = vpop.f32.mrf.mxu0
  %v646 = vadd.f32 %v558, %v645
  %v647 = vpop.f32.mrf.mxu0
  %648 = vmatprep.mubr.bf16.mxu0 0
  %649 = vmatmul.mubr.bf16.gmra.mxu0 %v530
  %v650 = vpop.f32.mrf.mxu0
  %v651 = vadd.f32 %v558, %v650
  %v652 = vpop.f32.mrf.mxu0
  %v653 = vpop.f32.mrf.mxu0
  %v654 = vadd.f32 %v558, %v653
  %v655 = vpop.f32.mrf.mxu0
  %656 = vmatprep.mubr.bf16.mxu0 0
  %657 = vmatmul.mubr.bf16.gmra.mxu0 %v531
  %v658 = vpop.f32.mrf.mxu0
  %v659 = vadd.f32 %v558, %v658
  %v660 = vpop.f32.mrf.mxu0
  %v661 = vpop.f32.mrf.mxu0
  %v662 = vadd.f32 %v558, %v661
  %v663 = vpop.f32.mrf.mxu0
  %664 = vmatprep.mubr.bf16.mxu0 0
  %665 = vmatmul.mubr.bf16.gmra.mxu0 %v532
  %v666 = vpop.f32.mrf.mxu0
  %v667 = vadd.f32 %v558, %v666
  %v668 = vpop.f32.mrf.mxu0
  %v669 = vpop.f32.mrf.mxu0
  %v670 = vadd.f32 %v558, %v669
  %v671 = vpop.f32.mrf.mxu0
  %672 = vmatprep.mubr.bf16.mxu0 0
  %673 = vmatmul.mubr.bf16.gmra.mxu0 %v533
  %v674 = vpop.f32.mrf.mxu0
  %v675 = vadd.f32 %v558, %v674
  %v676 = vpop.f32.mrf.mxu0
  %v677 = vpop.f32.mrf.mxu0
  %v678 = vadd.f32 %v558, %v677
  %v679 = vpop.f32.mrf.mxu0
  %680 = vmatprep.mubr.bf16.mxu0 0
  %681 = vmatmul.mubr.bf16.gmra.mxu0 %v534
  %v682 = vpop.f32.mrf.mxu0
  %v683 = vadd.f32 %v558, %v682
  %v684 = vpop.f32.mrf.mxu0
  %v685 = vpop.f32.mrf.mxu0
  %v686 = vadd.f32 %v558, %v685
  %v687 = vpop.f32.mrf.mxu0
  %688 = vmatprep.mubr.bf16.mxu0 0
  %689 = vmatmul.mubr.bf16.gmra.mxu0 %v535
  %v690 = vpop.f32.mrf.mxu0
  %v691 = vadd.f32 %v558, %v690
  %v692 = vpop.f32.mrf.mxu0
  %v693 = vpop.f32.mrf.mxu0
  %v694 = vadd.f32 %v558, %v693
  %v695 = vpop.f32.mrf.mxu0
  %696 = vmatprep.mubr.bf16.mxu0 0
  %697 = vmatmul.mubr.bf16.gmra.mxu0 %v536
  %v698 = vpop.f32.mrf.mxu0
  %v699 = vadd.f32 %v558, %v698
  %v700 = vpop.f32.mrf.mxu0
  %v701 = vpop.f32.mrf.mxu0
  %v702 = vadd.f32 %v558, %v701
  %v703 = vpop.f32.mrf.mxu0
  %704 = vdwg.mxu0
  %v705 = vmax.f32 %v643, 0.0
  %v706 = vmax.f32 %v646, 0.0
  %v707 = vmax.f32 %v651, 0.0
  %v708 = vmax.f32 %v654, 0.0
  %v709 = vmax.f32 %v659, 0.0
  %v710 = vmax.f32 %v662, 0.0
  %v711 = vmax.f32 %v667, 0.0
  %v712 = vmax.f32 %v670, 0.0
  %v713 = vmax.f32 %v675, 0.0
  %v714 = vmax.f32 %v678, 0.0
  %v715 = vmax.f32 %v683, 0.0
  %v716 = vmax.f32 %v686, 0.0
  %v717 = vmax.f32 %v691, 0.0
  %v718 = vmax.f32 %v694, 0.0
  %v719 = vmax.f32 %v699, 0.0
  %v720 = vmax.f32 %v702, 0.0
  %v721 = vld [vmem:[%s7] sm:$0x1]
  %v722 = vpack.c.bf16 %v706, %v705
  %v723 = vpack.c.bf16 %v708, %v707
  %v724 = vpack.c.bf16 %v710, %v709
  %v725 = vpack.c.bf16 %v712, %v711
  %v726 = vpack.c.bf16 %v714, %v713
  %v727 = vpack.c.bf16 %v716, %v715
  %v728 = vpack.c.bf16 %v718, %v717
  %v729 = vpack.c.bf16 %v720, %v719
  %v730 = vld [vmem:[#allocation2] sm:$0x1]
  %732 = vset.pattern.permute.xlu0 0
  %733 = vperm.xlu0 %732, %v730
  %v734 = vpop.permute.xlu0 %733
  %v736 = vlaneseq
  %v737 = vshrl.u32 %v736, 7
  %v738 = vsub.s32 0, %v737
  %v739 = vrot.slane %v734, %v738
  %vm740 = vcmask 523264
  %v742 = vsel %vm740, %v721, 0
  %v745 = vsel %vm740, %v722, 0
  %v748 = vsel %vm740, %v723, 0
  %v751 = vsel %vm740, %v724, 0
  %v754 = vsel %vm740, %v725, 0
  %v757 = vsel %vm740, %v726, 0
  %v760 = vsel %vm740, %v727, 0
  %v763 = vsel %vm740, %v728, 0
  %v766 = vsel %vm740, %v729, 0
  %768 = vmatprep.subr.bf16.mxu0 0
  %769 = vmatpush1.bf16.xpose.msra.mxu0 %v766
  %770 = vmatprep.subr.bf16.mxu0 0
  %771 = vmatpush1.bf16.xpose.msra.mxu0 %v763
  %772 = vmatprep.subr.bf16.mxu0 0
  %773 = vmatpush1.bf16.xpose.msra.mxu0 %v760
  %774 = vmatprep.subr.bf16.mxu0 0
  %775 = vmatpush1.bf16.xpose.msra.mxu0 %v757
  %776 = vmatprep.subr.bf16.mxu0 0
  %777 = vmatpush1.bf16.xpose.msra.mxu0 %v754
  %778 = vmatprep.subr.bf16.mxu0 0
  %779 = vmatpush1.bf16.xpose.msra.mxu0 %v751
  %780 = vmatprep.subr.bf16.mxu0 0
  %781 = vmatpush1.bf16.xpose.msra.mxu0 %v748
  %782 = vmatprep.subr.bf16.mxu0 0
  %783 = vmatpush1.bf16.xpose.msra.mxu0 %v745
  %784 = vmatprep.subr.bf16.mxu0 0
  %785 = vmatpush2.bf16.xpose.msra.mxu0 0
  %786 = vmatprep.subr.bf16.mxu0 0
  %787 = vmatpush2.bf16.xpose.msra.mxu0 0
  %788 = vmatprep.subr.bf16.mxu0 0
  %789 = vmatpush2.bf16.xpose.msra.mxu0 0
  %790 = vmatprep.subr.bf16.mxu0 0
  %791 = vmatpush2.bf16.xpose.msra.mxu0 0
  %792 = vmatprep.subr.bf16.mxu0 0
  %793 = vmatpush2.bf16.xpose.msra.mxu0 0
  %794 = vmatprep.subr.bf16.mxu0 0
  %795 = vmatpush2.bf16.xpose.msra.mxu0 0
  %796 = vmatprep.subr.bf16.mxu0 0
  %797 = vmatpush2.bf16.xpose.msra.mxu0 0
  %798 = vmatprep.subr.bf16.mxu0 0
  %799 = vmatpush2.bf16.xpose.msra.mxu0 0
  %800 = vmatprep.mubr.bf16.mxu0 0
  %801 = vmatmul.mubr.bf16.gmra.mxu0 %v742
  %v802 = vpop.f32.mrf.mxu0
  %v803 = vadd.f32 %v739, %v802
  %v804 = vpop.f32.mrf.mxu0
  %v805 = vpop.f32.mrf.mxu0
  %v806 = vpop.f32.mrf.mxu0
  %807 = vdwg.mxu0
  %v808 = vxor.u32 %v803, 2147483648
  %v809 = vmul.f32 %v808, 1.442695
  %v810 = vpow.pop %v809
  %v811 = vadd.f32 %v810, 1.0
  %v812 = vrcp.pop %v811
  %v813 = vmul.f32 1.0, %v812
  %814 = vst [vmem:[%s9] sm:$0x1] %v813
  // Predicated region
  $region38: #{churn_model_forward.1} parent=0 // pred_check
    _
  $region39: #{churn_model_forward.1} parent=0 // pred_check_branch
    %816 = sbr.rel (0) target = $region41
  $region40: #{churn_model_forward.1} parent=0 // pred_region
    _
  $region41: #{churn_model_forward.1} parent=0 // pred_fallthru
    _
  // Predicated region
  $region42: #{churn_model_forward.1} parent=0 // pred_check
    _
  $region43: #{churn_model_forward.1} parent=0 // pred_check_branch
    %818 = sbr.rel (0) target = $region45
  $region44: #{churn_model_forward.1} parent=0 // pred_region
    _
  $region45: #{churn_model_forward.1} parent=0 // pred_fallthru
    _

</llo_original>
